<compile_context>
chip_gen: v7x
topology: tpu7x:2x2x1
jax: 0.10.0
libtpu: 0.0.40
codegen_flags: <defaults>
</compile_context>

<pallas_src>
import jax
import jax.numpy as jnp
from jax import lax
from jax.experimental import pallas as pl
from jax.experimental.pallas import tpu as pltpu

LANE = 128  # TPU lane width: pad the edge axis so the score output is lane-dense


# ----------------------------------------------------------------------------
# Fused Pallas kernel: conv1 -> ReLU -> conv2 -> edge dot products (pos + neg)
# ----------------------------------------------------------------------------
def _fused_graphsage_kernel(a_ref, x_ref, ws1_ref, wn1_ref, b1_ref,
                            ws2_ref, wn2_ref, b2_ref,
                            src_sel_ref, dst_sel_ref, o_ref):
    a = a_ref[...]                        # (N, N) bf16 row-normalized adjacency
    x = x_ref[...].astype(jnp.bfloat16)   # (N, F_in)

    # ---- SAGEConv layer 1 ('mean') + ReLU -----------------------------------
    h_neigh = jnp.dot(a, x, preferred_element_type=jnp.float32)       # A @ X
    h1 = (jnp.dot(x, ws1_ref[...], preferred_element_type=jnp.float32)
          + jnp.dot(h_neigh.astype(jnp.bfloat16), wn1_ref[...],
                    preferred_element_type=jnp.float32)
          + b1_ref[...])
    h1 = jnp.maximum(h1, 0.0).astype(jnp.bfloat16)                    # ReLU

    # ---- SAGEConv layer 2: neighbor matmul reassociated as A @ (H @ Wn) -----
    z_neigh = jnp.dot(h1, wn2_ref[...], preferred_element_type=jnp.float32)
    h2 = (jnp.dot(h1, ws2_ref[...], preferred_element_type=jnp.float32)
          + jnp.dot(a, z_neigh.astype(jnp.bfloat16),
                    preferred_element_type=jnp.float32)
          + b2_ref[...])                                              # (N, F_out)

    # ---- per-edge dot products (pos & neg graphs together) ------------------
    # score[e] = h2[src_e] . h2[dst_e] = (S_src^T (h2 h2^T) S_dst)[e, e]
    h2b = h2.astype(jnp.bfloat16)
    gram = lax.dot_general(h2b, h2b, (((1,), (1,)), ((), ())),
                           preferred_element_type=jnp.float32)        # (N, N)
    t = jnp.dot(gram, dst_sel_ref[...],
                preferred_element_type=jnp.float32)                   # (N, E_pad)
    # one-hot selection columns are exact, so this is an exact gather of gram
    o_ref[...] = jnp.sum(src_sel_ref[...] * t, axis=0, keepdims=True)  # (1, E_pad)


# ----------------------------------------------------------------------------
# Wrapper (= Model.forward(g, neg_g, x) in the PyTorch reference)
# ----------------------------------------------------------------------------
def _build_edge_selectors(src, dst, n, e_pad):
    """(N, E_pad) one-hot column selectors; padded columns are all-zero."""
    e = src.shape[0]
    pad = e_pad - e
    src_p = jnp.pad(src, (0, pad), constant_values=-1)
    dst_p = jnp.pad(dst, (0, pad), constant_values=-1)
    node_ids = jnp.arange(n, dtype=jnp.int32)[:, None]
    src_sel = (node_ids == src_p[None, :]).astype(jnp.float32)
    dst_sel = (node_ids == dst_p[None, :]).astype(jnp.float32)
    return src_sel, dst_sel


def model_forward(params, a_norm, pos_edges, neg_edges, x):
    n, f_in = x.shape
    hidden = params["w_self1"].shape[1]
    f_out = params["w_self2"].shape[1]

    pos_src, pos_dst = pos_edges
    neg_src, neg_dst = neg_edges
    n_pos, n_neg = pos_src.shape[0], neg_src.shape[0]
    e_tot = n_pos + n_neg
    e_pad = ((e_tot + LANE - 1) // LANE) * LANE

    src_all = jnp.concatenate([pos_src, neg_src])
    dst_all = jnp.concatenate([pos_dst, neg_dst])
    src_sel, dst_sel = _build_edge_selectors(src_all, dst_all, n, e_pad)

    # bf16 MXU operands (f32 accumulation happens inside the kernel)
    a_bf = a_norm.astype(jnp.bfloat16)
    ws1 = params["w_self1"].astype(jnp.bfloat16)
    wn1 = params["w_neigh1"].astype(jnp.bfloat16)
    ws2 = params["w_self2"].astype(jnp.bfloat16)
    wn2 = params["w_neigh2"].astype(jnp.bfloat16)

    full = lambda i: (0, 0)
    scores = pl.pallas_call(
        _fused_graphsage_kernel,
        out_shape=jax.ShapeDtypeStruct((1, e_pad), jnp.float32),
        grid=(1,),
        in_specs=[
            pl.BlockSpec((n, n), full),            # A_norm (bf16)
            pl.BlockSpec((n, f_in), full),         # X
            pl.BlockSpec((f_in, hidden), full),    # W_self1
            pl.BlockSpec((f_in, hidden), full),    # W_neigh1
            pl.BlockSpec((1, hidden), full),       # b1
            pl.BlockSpec((hidden, f_out), full),   # W_self2
            pl.BlockSpec((hidden, f_out), full),   # W_neigh2
            pl.BlockSpec((1, f_out), full),        # b2
            pl.BlockSpec((n, e_pad), full),        # src one-hot selector
            pl.BlockSpec((n, e_pad), full),        # dst one-hot selector
        ],
        out_specs=pl.BlockSpec((1, e_pad), full),
        compiler_params=pltpu.CompilerParams(
            dimension_semantics=("arbitrary",)),
    )(a_bf, x, ws1, wn1, params["b1"], ws2, wn2, params["b2"],
      src_sel, dst_sel)

    flat = scores[0]
    pos_score = flat[:n_pos].reshape(n_pos, 1)
    neg_score = flat[n_pos:n_pos + n_neg].reshape(n_neg, 1)
    return pos_score, neg_score


def build_norm_adj(src, dst, n):
    """Dense adjacency with rows normalized by in-degree (mean aggregator)."""
    a = jnp.zeros((n, n), jnp.float32).at[dst, src].add(1.0)
    deg = jnp.maximum(a.sum(axis=1, keepdims=True), 1.0)
    return a / deg


# ----------------------------------------------------------------------------
# Plain-JAX reference mirroring the kernel's math (for the correctness check)
# ----------------------------------------------------------------------------
def reference_forward(params, a_norm, pos_edges, neg_edges, x):
    bf = jnp.bfloat16

    def mm(p, q):
        return jnp.dot(p.astype(bf), q.astype(bf),
                       preferred_element_type=jnp.float32)

    h_neigh = mm(a_norm, x)
    h1 = jnp.maximum(mm(x, params["w_self1"]) + mm(h_neigh, params["w_neigh1"])
                     + params["b1"], 0.0)
    h2 = (mm(h1, params["w_self2"]) + mm(a_norm, mm(h1, params["w_neigh2"]))
          + params["b2"])
    h2b = h2.astype(bf).astype(jnp.float32)

    pos_src, pos_dst = pos_edges
    neg_src, neg_dst = neg_edges
    pos = jnp.sum(h2b[pos_src] * h2b[pos_dst], axis=-1, keepdims=True)
    neg = jnp.sum(h2b[neg_src] * h2b[neg_dst], axis=-1, keepdims=True)
    return pos, neg


# ----------------------------------------------------------------------------
# Main
# ----------------------------------------------------------------------------
if __name__ == "__main__":
    key = jax.random.PRNGKey(0)
    N = 8                                   # number of graph nodes
    in_features, hidden_features, out_features = 16, 32, 16

    # Positive graph: a directed ring plus a few chords.
    src = jnp.array([0, 1, 2, 3, 4, 5, 6, 7, 0, 2, 4, 6], dtype=jnp.int32)
    dst = jnp.array([1, 2, 3, 4, 5, 6, 7, 0, 4, 6, 0, 2], dtype=jnp.int32)

    (k_ns, k_nd, k_x, kw1, kw2, kw3, kw4, kb1, kb2) = jax.random.split(key, 9)

    # Negative graph: same node set, random edge endpoints (same #edges).
    neg_src = jax.random.randint(k_ns, (src.shape[0],), 0, N, dtype=jnp.int32)
    neg_dst = jax.random.randint(k_nd, (src.shape[0],), 0, N, dtype=jnp.int32)

    # Node features.
    x = jax.random.normal(k_x, (N, in_features), jnp.float32)

    # Deterministic Glorot-uniform weights, stored as (in, out) so the kernel
    # computes H @ W directly (equivalent to PyTorch Linear's x @ W.T).
    def glorot(k, shape):
        fan_in, fan_out = shape
        lim = (6.0 / (fan_in + fan_out)) ** 0.5
        return jax.random.uniform(k, shape, jnp.float32, -lim, lim)

    params = dict(
        w_self1=glorot(kw1, (in_features, hidden_features)),
        w_neigh1=glorot(kw2, (in_features, hidden_features)),
        b1=0.1 * jax.random.normal(kb1, (1, hidden_features), jnp.float32),
        w_self2=glorot(kw3, (hidden_features, out_features)),
        w_neigh2=glorot(kw4, (hidden_features, out_features)),
        b2=0.1 * jax.random.normal(kb2, (1, out_features), jnp.float32),
    )

    a_norm = build_norm_adj(src, dst, N)

    fwd = jax.jit(model_forward)
    pos_score, neg_score = fwd(params, a_norm, (src, dst), (neg_src, neg_dst), x)
    jax.block_until_ready((pos_score, neg_score))

    pos_ref, neg_ref = reference_forward(params, a_norm, (src, dst),
                                         (neg_src, neg_dst), x)

    assert pos_score.shape == (src.shape[0], 1)
    assert neg_score.shape == (neg_src.shape[0], 1)
    assert pos_score.dtype == jnp.float32 and neg_score.dtype == jnp.float32
    assert jnp.allclose(pos_score, pos_ref, rtol=5e-2, atol=1e-1)
    assert jnp.allclose(neg_score, neg_ref, rtol=5e-2, atol=1e-1)
    print("KERNEL_OK")
</pallas_src>

<mosaic_0001>
module attributes {stable_mosaic.version = 11 : i64} {
  func.func @_fused_graphsage_kernel(%arg0: i32, %arg1: memref<8x8xbf16, #tpu.memory_space<vmem>>, %arg2: memref<8x16xf32, #tpu.memory_space<vmem>>, %arg3: memref<16x32xbf16, #tpu.memory_space<vmem>>, %arg4: memref<16x32xbf16, #tpu.memory_space<vmem>>, %arg5: memref<1x32xf32, #tpu.memory_space<vmem>>, %arg6: memref<32x16xbf16, #tpu.memory_space<vmem>>, %arg7: memref<32x16xbf16, #tpu.memory_space<vmem>>, %arg8: memref<1x16xf32, #tpu.memory_space<vmem>>, %arg9: memref<8x128xf32, #tpu.memory_space<vmem>>, %arg10: memref<8x128xf32, #tpu.memory_space<vmem>>, %arg11: memref<1x128xf32, #tpu.memory_space<vmem>>) attributes {dimension_semantics = [#tpu.dimension_semantics<arbitrary>], iteration_bounds = array<i64: 1>, scalar_prefetch = 0 : i64, scratch_operands = 0 : i64, tpu.core_type = #tpu.core_type<tc>, window_params = [{pipeline_mode = #tpu.pipeline_mode<synchronous>, transform_indices = @transform_0, window_bounds = array<i64: 8, 8>}, {pipeline_mode = #tpu.pipeline_mode<synchronous>, transform_indices = @transform_1, window_bounds = array<i64: 8, 16>}, {pipeline_mode = #tpu.pipeline_mode<synchronous>, transform_indices = @transform_2, window_bounds = array<i64: 16, 32>}, {pipeline_mode = #tpu.pipeline_mode<synchronous>, transform_indices = @transform_3, window_bounds = array<i64: 16, 32>}, {pipeline_mode = #tpu.pipeline_mode<synchronous>, transform_indices = @transform_4, window_bounds = array<i64: 1, 32>}, {pipeline_mode = #tpu.pipeline_mode<synchronous>, transform_indices = @transform_5, window_bounds = array<i64: 32, 16>}, {pipeline_mode = #tpu.pipeline_mode<synchronous>, transform_indices = @transform_6, window_bounds = array<i64: 32, 16>}, {pipeline_mode = #tpu.pipeline_mode<synchronous>, transform_indices = @transform_7, window_bounds = array<i64: 1, 16>}, {pipeline_mode = #tpu.pipeline_mode<synchronous>, transform_indices = @transform_8, window_bounds = array<i64: 8, 128>}, {pipeline_mode = #tpu.pipeline_mode<synchronous>, transform_indices = @transform_9, window_bounds = array<i64: 8, 128>}, {pipeline_mode = #tpu.pipeline_mode<synchronous>, transform_indices = @transform_10, window_bounds = array<i64: 1, 128>}]} {
    %c0 = arith.constant 0 : index
    %c0_0 = arith.constant 0 : index
    %0 = vector.load %arg1[%c0, %c0_0] : memref<8x8xbf16, #tpu.memory_space<vmem>>, vector<8x8xbf16>
    %c0_1 = arith.constant 0 : index
    %c0_2 = arith.constant 0 : index
    %1 = vector.load %arg2[%c0_1, %c0_2] : memref<8x16xf32, #tpu.memory_space<vmem>>, vector<8x16xf32>
    %2 = arith.truncf %1 : vector<8x16xf32> to vector<8x16xbf16>
    %cst = arith.constant dense<0.000000e+00> : vector<8x16xf32>
    %3 = tpu.matmul %0, %2, %cst {dimension_numbers = #tpu.dot_dimension_numbers<[1], [0], [0], [1], [0, 0, 1, 1], [], []>} : vector<8x8xbf16>, vector<8x16xbf16>, vector<8x16xf32> -> vector<8x16xf32>
    %c0_3 = arith.constant 0 : index
    %c0_4 = arith.constant 0 : index
    %4 = vector.load %arg3[%c0_3, %c0_4] : memref<16x32xbf16, #tpu.memory_space<vmem>>, vector<16x32xbf16>
    %cst_5 = arith.constant dense<0.000000e+00> : vector<8x32xf32>
    %5 = tpu.matmul %2, %4, %cst_5 {dimension_numbers = #tpu.dot_dimension_numbers<[1], [0], [0], [1], [0, 0, 1, 1], [], []>} : vector<8x16xbf16>, vector<16x32xbf16>, vector<8x32xf32> -> vector<8x32xf32>
    %6 = arith.truncf %3 : vector<8x16xf32> to vector<8x16xbf16>
    %c0_6 = arith.constant 0 : index
    %c0_7 = arith.constant 0 : index
    %7 = vector.load %arg4[%c0_6, %c0_7] : memref<16x32xbf16, #tpu.memory_space<vmem>>, vector<16x32xbf16>
    %cst_8 = arith.constant dense<0.000000e+00> : vector<8x32xf32>
    %8 = tpu.matmul %6, %7, %cst_8 {dimension_numbers = #tpu.dot_dimension_numbers<[1], [0], [0], [1], [0, 0, 1, 1], [], []>} : vector<8x16xbf16>, vector<16x32xbf16>, vector<8x32xf32> -> vector<8x32xf32>
    %9 = arith.addf %5, %8 : vector<8x32xf32>
    %c0_9 = arith.constant 0 : index
    %c0_10 = arith.constant 0 : index
    %10 = vector.load %arg5[%c0_9, %c0_10] : memref<1x32xf32, #tpu.memory_space<vmem>>, vector<1x32xf32>
    %11 = vector.broadcast %10 : vector<1x32xf32> to vector<8x32xf32>
    %12 = arith.addf %9, %11 : vector<8x32xf32>
    %cst_11 = arith.constant 0.000000e+00 : f32
    %13 = vector.broadcast %cst_11 : f32 to vector<8x32xf32>
    %14 = arith.maximumf %12, %13 : vector<8x32xf32>
    %15 = arith.truncf %14 : vector<8x32xf32> to vector<8x32xbf16>
    %c0_12 = arith.constant 0 : index
    %c0_13 = arith.constant 0 : index
    %16 = vector.load %arg7[%c0_12, %c0_13] : memref<32x16xbf16, #tpu.memory_space<vmem>>, vector<32x16xbf16>
    %cst_14 = arith.constant dense<0.000000e+00> : vector<8x16xf32>
    %17 = tpu.matmul %15, %16, %cst_14 {dimension_numbers = #tpu.dot_dimension_numbers<[1], [0], [0], [1], [0, 0, 1, 1], [], []>} : vector<8x32xbf16>, vector<32x16xbf16>, vector<8x16xf32> -> vector<8x16xf32>
    %c0_15 = arith.constant 0 : index
    %c0_16 = arith.constant 0 : index
    %18 = vector.load %arg6[%c0_15, %c0_16] : memref<32x16xbf16, #tpu.memory_space<vmem>>, vector<32x16xbf16>
    %cst_17 = arith.constant dense<0.000000e+00> : vector<8x16xf32>
    %19 = tpu.matmul %15, %18, %cst_17 {dimension_numbers = #tpu.dot_dimension_numbers<[1], [0], [0], [1], [0, 0, 1, 1], [], []>} : vector<8x32xbf16>, vector<32x16xbf16>, vector<8x16xf32> -> vector<8x16xf32>
    %20 = arith.truncf %17 : vector<8x16xf32> to vector<8x16xbf16>
    %cst_18 = arith.constant dense<0.000000e+00> : vector<8x16xf32>
    %21 = tpu.matmul %0, %20, %cst_18 {dimension_numbers = #tpu.dot_dimension_numbers<[1], [0], [0], [1], [0, 0, 1, 1], [], []>} : vector<8x8xbf16>, vector<8x16xbf16>, vector<8x16xf32> -> vector<8x16xf32>
    %22 = arith.addf %19, %21 : vector<8x16xf32>
    %c0_19 = arith.constant 0 : index
    %c0_20 = arith.constant 0 : index
    %23 = vector.load %arg8[%c0_19, %c0_20] : memref<1x16xf32, #tpu.memory_space<vmem>>, vector<1x16xf32>
    %24 = vector.broadcast %23 : vector<1x16xf32> to vector<8x16xf32>
    %25 = arith.addf %22, %24 : vector<8x16xf32>
    %26 = arith.truncf %25 : vector<8x16xf32> to vector<8x16xbf16>
    %cst_21 = arith.constant dense<0.000000e+00> : vector<8x8xf32>
    %27 = tpu.matmul %26, %26, %cst_21 {dimension_numbers = #tpu.dot_dimension_numbers<[1], [1], [0], [0], [0, 0, 1, 0], [], []>} : vector<8x16xbf16>, vector<8x16xbf16>, vector<8x8xf32> -> vector<8x8xf32>
    %c0_22 = arith.constant 0 : index
    %c0_23 = arith.constant 0 : index
    %28 = vector.load %arg10[%c0_22, %c0_23] : memref<8x128xf32, #tpu.memory_space<vmem>>, vector<8x128xf32>
    %cst_24 = arith.constant dense<0.000000e+00> : vector<8x128xf32>
    %29 = tpu.matmul %27, %28, %cst_24 {dimension_numbers = #tpu.dot_dimension_numbers<[1], [0], [0], [1], [0, 0, 1, 1], [], []>} : vector<8x8xf32>, vector<8x128xf32>, vector<8x128xf32> -> vector<8x128xf32>
    %c0_25 = arith.constant 0 : index
    %c0_26 = arith.constant 0 : index
    %30 = vector.load %arg9[%c0_25, %c0_26] : memref<8x128xf32, #tpu.memory_space<vmem>>, vector<8x128xf32>
    %31 = arith.mulf %30, %29 : vector<8x128xf32>
    %cst_27 = arith.constant dense<0.000000e+00> : vector<128xf32>
    %32 = vector.multi_reduction <add>, %31, %cst_27 [0] : vector<8x128xf32> to vector<128xf32>
    %33 = vector.shape_cast %32 : vector<128xf32> to vector<1x128xf32>
    %c0_28 = arith.constant 0 : index
    %c0_29 = arith.constant 0 : index
    %34 = vector.load %arg11[%c0_28, %c0_29] : memref<1x128xf32, #tpu.memory_space<vmem>>, vector<1x128xf32>
    tpu.vector_store %arg11[%c0_28, %c0_29], %33 {strides = array<i32>} : memref<1x128xf32, #tpu.memory_space<vmem>>, vector<1x128xf32>,
    return
  }
  func.func @transform_0(%arg0: i32) -> (i32, i32) {
    %c0_i32 = arith.constant 0 : i32
    %c0_i32_0 = arith.constant 0 : i32
    %c0_i32_1 = arith.constant 0 : i32
    return %c0_i32, %c0_i32_0 : i32, i32
  }
  func.func @transform_1(%arg0: i32) -> (i32, i32) {
    %c0_i32 = arith.constant 0 : i32
    %c0_i32_0 = arith.constant 0 : i32
    %c0_i32_1 = arith.constant 0 : i32
    return %c0_i32, %c0_i32_0 : i32, i32
  }
  func.func @transform_2(%arg0: i32) -> (i32, i32) {
    %c0_i32 = arith.constant 0 : i32
    %c0_i32_0 = arith.constant 0 : i32
    %c0_i32_1 = arith.constant 0 : i32
    return %c0_i32, %c0_i32_0 : i32, i32
  }
  func.func @transform_3(%arg0: i32) -> (i32, i32) {
    %c0_i32 = arith.constant 0 : i32
    %c0_i32_0 = arith.constant 0 : i32
    %c0_i32_1 = arith.constant 0 : i32
    return %c0_i32, %c0_i32_0 : i32, i32
  }
  func.func @transform_4(%arg0: i32) -> (i32, i32) {
    %c0_i32 = arith.constant 0 : i32
    %c0_i32_0 = arith.constant 0 : i32
    %c0_i32_1 = arith.constant 0 : i32
    return %c0_i32, %c0_i32_0 : i32, i32
  }
  func.func @transform_5(%arg0: i32) -> (i32, i32) {
    %c0_i32 = arith.constant 0 : i32
    %c0_i32_0 = arith.constant 0 : i32
    %c0_i32_1 = arith.constant 0 : i32
    return %c0_i32, %c0_i32_0 : i32, i32
  }
  func.func @transform_6(%arg0: i32) -> (i32, i32) {
    %c0_i32 = arith.constant 0 : i32
    %c0_i32_0 = arith.constant 0 : i32
    %c0_i32_1 = arith.constant 0 : i32
    return %c0_i32, %c0_i32_0 : i32, i32
  }
  func.func @transform_7(%arg0: i32) -> (i32, i32) {
    %c0_i32 = arith.constant 0 : i32
    %c0_i32_0 = arith.constant 0 : i32
    %c0_i32_1 = arith.constant 0 : i32
    return %c0_i32, %c0_i32_0 : i32, i32
  }
  func.func @transform_8(%arg0: i32) -> (i32, i32) {
    %c0_i32 = arith.constant 0 : i32
    %c0_i32_0 = arith.constant 0 : i32
    %c0_i32_1 = arith.constant 0 : i32
    return %c0_i32, %c0_i32_0 : i32, i32
  }
  func.func @transform_9(%arg0: i32) -> (i32, i32) {
    %c0_i32 = arith.constant 0 : i32
    %c0_i32_0 = arith.constant 0 : i32
    %c0_i32_1 = arith.constant 0 : i32
    return %c0_i32, %c0_i32_0 : i32, i32
  }
  func.func @transform_10(%arg0: i32) -> (i32, i32) {
    %c0_i32 = arith.constant 0 : i32
    %c0_i32_0 = arith.constant 0 : i32
    %c0_i32_1 = arith.constant 0 : i32
    return %c0_i32, %c0_i32_0 : i32, i32
  }
}

</mosaic_0001>

<llo_original>
// kernel: model_forward.1
$region0: #{model_forward.1}
  #allocation0 [shape = 'u32[]', space=smem, size = 0x4, offset = 0x4, fixed_abs, tag = 'smem constant byte address 0x4 - core index']
  #allocation1 [shape = 'u32[144,128]{1,0:T(1,128)}', space=vmem, size = 0x12000, scoped, tag = 'internal scratch']
  %s0 = inlined_call_operand.vmem [shape: bf16[8,8], index: 0, kind: input, shape index: {}]
  %s1 = inlined_call_operand.vmem [shape: f32[8,16], index: 1, kind: input, shape index: {}]
  %s2 = inlined_call_operand.vmem [shape: bf16[16,32], index: 2, kind: input, shape index: {}]
  %s3 = inlined_call_operand.vmem [shape: bf16[16,32], index: 3, kind: input, shape index: {}]
  %s4 = inlined_call_operand.vmem [shape: f32[1,32], index: 4, kind: input, shape index: {}]
  %s5 = inlined_call_operand.vmem [shape: bf16[32,16], index: 5, kind: input, shape index: {}]
  %s6 = inlined_call_operand.vmem [shape: bf16[32,16], index: 6, kind: input, shape index: {}]
  %s7 = inlined_call_operand.vmem [shape: f32[1,16], index: 7, kind: input, shape index: {}]
  %s8 = inlined_call_operand.vmem [shape: f32[8,128], index: 8, kind: input, shape index: {}]
  %s9 = inlined_call_operand.vmem [shape: f32[8,128], index: 9, kind: input, shape index: {}]
  %s10 = inlined_call_operand.vmem [shape: f32[1,128], index: 10, kind: output, shape index: {}]
  %s11 = sld [smem:[#allocation0]]
  $region50: #{model_forward.1} parent=0
    _
  %s13 = ssub.s32 1, %s11
  %s14 = scalar_select 0, %s13, %s11
  // Predicated region
  $region2: #{model_forward.1} parent=0 // pred_check
    _
  $region3: #{model_forward.1} parent=0 // pred_check_branch
    %16 = sbr.rel (0) target = $region5
  $region4: #{model_forward.1} parent=0 // pred_region
    _
  $region5: #{model_forward.1} parent=0 // pred_fallthru
    _
  // Predicated region
  $region6: #{model_forward.1} parent=0 // pred_check
    _
  $region7: #{model_forward.1} parent=0 // pred_check_branch
    %18 = sbr.rel (0) target = $region9
  $region8: #{model_forward.1} parent=0 // pred_region
    _
  $region9: #{model_forward.1} parent=0 // pred_fallthru
    _
  // Predicated region
  $region10: #{model_forward.1} parent=0 // pred_check
    _
  $region11: #{model_forward.1} parent=0 // pred_check_branch
    %20 = sbr.rel (0) target = $region13
  $region12: #{model_forward.1} parent=0 // pred_region
    _
  $region13: #{model_forward.1} parent=0 // pred_fallthru
    _
  // Predicated region
  $region14: #{model_forward.1} parent=0 // pred_check
    _
  $region15: #{model_forward.1} parent=0 // pred_check_branch
    %22 = sbr.rel (0) target = $region17
  $region16: #{model_forward.1} parent=0 // pred_region
    _
  $region17: #{model_forward.1} parent=0 // pred_fallthru
    _
  // Predicated region
  $region18: #{model_forward.1} parent=0 // pred_check
    _
  $region19: #{model_forward.1} parent=0 // pred_check_branch
    %24 = sbr.rel (0) target = $region21
  $region20: #{model_forward.1} parent=0 // pred_region
    _
  $region21: #{model_forward.1} parent=0 // pred_fallthru
    _
  // Predicated region
  $region22: #{model_forward.1} parent=0 // pred_check
    _
  $region23: #{model_forward.1} parent=0 // pred_check_branch
    %26 = sbr.rel (0) target = $region25
  $region24: #{model_forward.1} parent=0 // pred_region
    _
  $region25: #{model_forward.1} parent=0 // pred_fallthru
    _
  // Predicated region
  $region26: #{model_forward.1} parent=0 // pred_check
    _
  $region27: #{model_forward.1} parent=0 // pred_check_branch
    %28 = sbr.rel (0) target = $region29
  $region28: #{model_forward.1} parent=0 // pred_region
    _
  $region29: #{model_forward.1} parent=0 // pred_fallthru
    _
  // Predicated region
  $region30: #{model_forward.1} parent=0 // pred_check
    _
  $region31: #{model_forward.1} parent=0 // pred_check_branch
    %30 = sbr.rel (0) target = $region33
  $region32: #{model_forward.1} parent=0 // pred_region
    _
  $region33: #{model_forward.1} parent=0 // pred_fallthru
    _
  // Predicated region
  $region34: #{model_forward.1} parent=0 // pred_check
    _
  $region35: #{model_forward.1} parent=0 // pred_check_branch
    %32 = sbr.rel (0) target = $region37
  $region36: #{model_forward.1} parent=0 // pred_region
    _
  $region37: #{model_forward.1} parent=0 // pred_fallthru
    _
  // Predicated region
  $region38: #{model_forward.1} parent=0 // pred_check
    _
  $region39: #{model_forward.1} parent=0 // pred_check_branch
    %34 = sbr.rel (0) target = $region41
  $region40: #{model_forward.1} parent=0 // pred_region
    _
  $region41: #{model_forward.1} parent=0 // pred_fallthru
    _
  %v36 = vld [vmem:[%s0] sm:$0xf]
  %v37 = vld [vmem:[%s1] sm:$0xff]
  %v38 = vpack.c.bf16 %v37, %v37
  %vm39 = vcmask 64512
  %v41 = vsel %vm39, %v36, 0
  %vm43 = vcmask 1043456
  %v45 = vsel %vm43, %v38, 0
  %47 = vmatprep.subr.bf16.mxu0 0
  %48 = vmatpush1.bf16.msra.mxu0 %v45
  %49 = vmatprep.subr.bf16.mxu0 0
  %50 = vmatpush1.bf16.msra.mxu0 0
  %51 = vmatprep.subr.bf16.mxu0 0
  %52 = vmatpush1.bf16.msra.mxu0 0
  %53 = vmatprep.subr.bf16.mxu0 0
  %54 = vmatpush1.bf16.msra.mxu0 0
  %55 = vmatprep.subr.bf16.mxu0 0
  %56 = vmatpush1.bf16.msra.mxu0 0
  %57 = vmatprep.subr.bf16.mxu0 0
  %58 = vmatpush1.bf16.msra.mxu0 0
  %59 = vmatprep.subr.bf16.mxu0 0
  %60 = vmatpush1.bf16.msra.mxu0 0
  %61 = vmatprep.subr.bf16.mxu0 0
  %62 = vmatpush1.bf16.msra.mxu0 0
  %63 = vmatprep.subr.bf16.mxu0 0
  %64 = vmatpush1.bf16.msra.mxu0 0
  %65 = vmatprep.subr.bf16.mxu0 0
  %66 = vmatpush1.bf16.msra.mxu0 0
  %67 = vmatprep.subr.bf16.mxu0 0
  %68 = vmatpush1.bf16.msra.mxu0 0
  %69 = vmatprep.subr.bf16.mxu0 0
  %70 = vmatpush1.bf16.msra.mxu0 0
  %71 = vmatprep.subr.bf16.mxu0 0
  %72 = vmatpush1.bf16.msra.mxu0 0
  %73 = vmatprep.subr.bf16.mxu0 0
  %74 = vmatpush1.bf16.msra.mxu0 0
  %75 = vmatprep.subr.bf16.mxu0 0
  %76 = vmatpush1.bf16.msra.mxu0 0
  %77 = vmatprep.subr.bf16.mxu0 0
  %78 = vmatpush1.bf16.msra.mxu0 0
  %79 = vmatprep.mubr.bf16.mxu0 0
  %80 = vmatmul.mubr.bf16.gmra.mrb[0].mxu0 %v41
  %v81 = vpop.f32.mrb[0].mxu0
  %v82 = vadd.f32 0.0, %v81
  %v83 = vpop.f32.mrb[0].mxu0
  %v84 = vpop.f32.mrb[0].mxu0
  %v85 = vpop.f32.mrb[0].mxu0
  %86 = vdwg.mxu0
  %v87 = vld [vmem:[%s2] sm:$0xf]
  %v88 = vld [vmem:[%s2 + $0x4] sm:$0xf]
  %v89 = vpack.c.bf16 %v82, %v82
  %v90 = vld [vmem:[%s3] sm:$0xf]
  %v91 = vld [vmem:[%s3 + $0x4] sm:$0xf]
  %v94 = vunpack.c.l.b16 %v90
  %v95 = vunpack.c.l.b16 %v91
  %v96 = vpack.c.b16 %v95, %v94
  %vm98 = vcmask 130048
  %v100 = vsel %vm98, %v89, 0
  %102 = vmatprep.subr.bf16.mxu0 0
  %103 = vmatpush1.bf16.msra.mxu0 %v96
  %104 = vmatprep.subr.bf16.mxu0 0
  %105 = vmatpush1.bf16.msra.mxu0 0
  %106 = vmatprep.subr.bf16.mxu0 0
  %107 = vmatpush1.bf16.msra.mxu0 0
  %108 = vmatprep.subr.bf16.mxu0 0
  %109 = vmatpush1.bf16.msra.mxu0 0
  %110 = vmatprep.subr.bf16.mxu0 0
  %111 = vmatpush1.bf16.msra.mxu0 0
  %112 = vmatprep.subr.bf16.mxu0 0
  %113 = vmatpush1.bf16.msra.mxu0 0
  %114 = vmatprep.subr.bf16.mxu0 0
  %115 = vmatpush1.bf16.msra.mxu0 0
  %116 = vmatprep.subr.bf16.mxu0 0
  %117 = vmatpush1.bf16.msra.mxu0 0
  %118 = vmatprep.subr.bf16.mxu0 0
  %119 = vmatpush1.bf16.msra.mxu0 0
  %120 = vmatprep.subr.bf16.mxu0 0
  %121 = vmatpush1.bf16.msra.mxu0 0
  %122 = vmatprep.subr.bf16.mxu0 0
  %123 = vmatpush1.bf16.msra.mxu0 0
  %124 = vmatprep.subr.bf16.mxu0 0
  %125 = vmatpush1.bf16.msra.mxu0 0
  %126 = vmatprep.subr.bf16.mxu0 0
  %127 = vmatpush1.bf16.msra.mxu0 0
  %128 = vmatprep.subr.bf16.mxu0 0
  %129 = vmatpush1.bf16.msra.mxu0 0
  %130 = vmatprep.subr.bf16.mxu0 0
  %131 = vmatpush1.bf16.msra.mxu0 0
  %132 = vmatprep.subr.bf16.mxu0 0
  %133 = vmatpush1.bf16.msra.mxu0 0
  %134 = vmatprep.mubr.bf16.mxu0 0
  %135 = vmatmul.mubr.bf16.gmra.mrb[0].mxu0 %v100
  %v136 = vpop.f32.mrb[0].mxu0
  %v137 = vadd.f32 0.0, %v136
  %v138 = vpop.f32.mrb[0].mxu0
  %v139 = vpop.f32.mrb[0].mxu0
  %v140 = vpop.f32.mrb[0].mxu0
  %141 = vdwg.mxu0
  %v144 = vunpack.c.l.b16 %v87
  %v145 = vunpack.c.l.b16 %v88
  %v146 = vpack.c.b16 %v145, %v144
  %v148 = vsel %vm98, %v38, 0
  %150 = vmatprep.subr.bf16.mxu0 0
  %151 = vmatpush1.bf16.msra.mxu0 %v146
  %152 = vmatprep.subr.bf16.mxu0 0
  %153 = vmatpush1.bf16.msra.mxu0 0
  %154 = vmatprep.subr.bf16.mxu0 0
  %155 = vmatpush1.bf16.msra.mxu0 0
  %156 = vmatprep.subr.bf16.mxu0 0
  %157 = vmatpush1.bf16.msra.mxu0 0
  %158 = vmatprep.subr.bf16.mxu0 0
  %159 = vmatpush1.bf16.msra.mxu0 0
  %160 = vmatprep.subr.bf16.mxu0 0
  %161 = vmatpush1.bf16.msra.mxu0 0
  %162 = vmatprep.subr.bf16.mxu0 0
  %163 = vmatpush1.bf16.msra.mxu0 0
  %164 = vmatprep.subr.bf16.mxu0 0
  %165 = vmatpush1.bf16.msra.mxu0 0
  %166 = vmatprep.subr.bf16.mxu0 0
  %167 = vmatpush1.bf16.msra.mxu0 0
  %168 = vmatprep.subr.bf16.mxu0 0
  %169 = vmatpush1.bf16.msra.mxu0 0
  %170 = vmatprep.subr.bf16.mxu0 0
  %171 = vmatpush1.bf16.msra.mxu0 0
  %172 = vmatprep.subr.bf16.mxu0 0
  %173 = vmatpush1.bf16.msra.mxu0 0
  %174 = vmatprep.subr.bf16.mxu0 0
  %175 = vmatpush1.bf16.msra.mxu0 0
  %176 = vmatprep.subr.bf16.mxu0 0
  %177 = vmatpush1.bf16.msra.mxu0 0
  %178 = vmatprep.subr.bf16.mxu0 0
  %179 = vmatpush1.bf16.msra.mxu0 0
  %180 = vmatprep.subr.bf16.mxu0 0
  %181 = vmatpush1.bf16.msra.mxu0 0
  %182 = vmatprep.mubr.bf16.mxu0 0
  %183 = vmatmul.mubr.bf16.gmra.mrb[0].mxu0 %v148
  %v184 = vpop.f32.mrb[0].mxu0
  %v185 = vadd.f32 %v137, %v184
  %v186 = vpop.f32.mrb[0].mxu0
  %v187 = vpop.f32.mrb[0].mxu0
  %v188 = vpop.f32.mrb[0].mxu0
  %189 = vdwg.mxu0
  %v190 = vld [vmem:[%s4] sm:$0x1]
  %v192 = vlaneseq
  %v193 = vshrl.u32 %v192, 7
  %v194 = vsub.s32 0, %v193
  %v195 = vrot.slane %v190, %v194
  %v197 = vadd.f32 %v185, %v195
  %v198 = vmax.f32 %v197, 0.0
  %v199 = vpack.c.bf16 %v198, %v198
  %v200 = vld [vmem:[%s6] sm:$0xf]
  %v201 = vld [vmem:[%s6 + $0x4] sm:$0xf]
  %v202 = vld [vmem:[%s6 + $0x8] sm:$0xf]
  %v203 = vld [vmem:[%s6 + $0xc] sm:$0xf]
  %v208 = vunpack.c.l.b16 %v200
  %v209 = vunpack.c.l.b16 %v201
  %v210 = vunpack.c.l.b16 %v202
  %v211 = vunpack.c.l.b16 %v203
  %v212 = vpack.c.b16 %v209, %v208
  %v213 = vpack.c.b16 %v211, %v210
  %vm216 = vcmask 261120
  %v218 = vsel %vm216, %v199, 0
  %220 = vmatprep.subr.bf16.mxu0 0
  %221 = vmatpush1.bf16.msra.mxu0 %v212
  %222 = vmatprep.subr.bf16.mxu0 0
  %223 = vmatpush1.bf16.msra.mxu0 %v213
  %224 = vmatprep.subr.bf16.mxu0 0
  %225 = vmatpush1.bf16.msra.mxu0 0
  %226 = vmatprep.subr.bf16.mxu0 0
  %227 = vmatpush1.bf16.msra.mxu0 0
  %228 = vmatprep.subr.bf16.mxu0 0
  %229 = vmatpush1.bf16.msra.mxu0 0
  %230 = vmatprep.subr.bf16.mxu0 0
  %231 = vmatpush1.bf16.msra.mxu0 0
  %232 = vmatprep.subr.bf16.mxu0 0
  %233 = vmatpush1.bf16.msra.mxu0 0
  %234 = vmatprep.subr.bf16.mxu0 0
  %235 = vmatpush1.bf16.msra.mxu0 0
  %236 = vmatprep.subr.bf16.mxu0 0
  %237 = vmatpush1.bf16.msra.mxu0 0
  %238 = vmatprep.subr.bf16.mxu0 0
  %239 = vmatpush1.bf16.msra.mxu0 0
  %240 = vmatprep.subr.bf16.mxu0 0
  %241 = vmatpush1.bf16.msra.mxu0 0
  %242 = vmatprep.subr.bf16.mxu0 0
  %243 = vmatpush1.bf16.msra.mxu0 0
  %244 = vmatprep.subr.bf16.mxu0 0
  %245 = vmatpush1.bf16.msra.mxu0 0
  %246 = vmatprep.subr.bf16.mxu0 0
  %247 = vmatpush1.bf16.msra.mxu0 0
  %248 = vmatprep.subr.bf16.mxu0 0
  %249 = vmatpush1.bf16.msra.mxu0 0
  %250 = vmatprep.subr.bf16.mxu0 0
  %251 = vmatpush1.bf16.msra.mxu0 0
  %252 = vmatprep.mubr.bf16.mxu0 0
  %253 = vmatmul.mubr.bf16.gmra.mrb[0].mxu0 %v218
  %v254 = vpop.f32.mrb[0].mxu0
  %v255 = vadd.f32 0.0, %v254
  %v256 = vpop.f32.mrb[0].mxu0
  %v257 = vpop.f32.mrb[0].mxu0
  %v258 = vpop.f32.mrb[0].mxu0
  %259 = vdwg.mxu0
  %v260 = vld [vmem:[%s5] sm:$0xf]
  %v261 = vld [vmem:[%s5 + $0x4] sm:$0xf]
  %v262 = vld [vmem:[%s5 + $0x8] sm:$0xf]
  %v263 = vld [vmem:[%s5 + $0xc] sm:$0xf]
  %v264 = vpack.c.bf16 %v255, %v255
  %v266 = vsel %vm43, %v264, 0
  %268 = vmatprep.subr.bf16.mxu0 0
  %269 = vmatpush1.bf16.msra.mxu0 %v266
  %270 = vmatprep.subr.bf16.mxu0 0
  %271 = vmatpush1.bf16.msra.mxu0 0
  %272 = vmatprep.subr.bf16.mxu0 0
  %273 = vmatpush1.bf16.msra.mxu0 0
  %274 = vmatprep.subr.bf16.mxu0 0
  %275 = vmatpush1.bf16.msra.mxu0 0
  %276 = vmatprep.subr.bf16.mxu0 0
  %277 = vmatpush1.bf16.msra.mxu0 0
  %278 = vmatprep.subr.bf16.mxu0 0
  %279 = vmatpush1.bf16.msra.mxu0 0
  %280 = vmatprep.subr.bf16.mxu0 0
  %281 = vmatpush1.bf16.msra.mxu0 0
  %282 = vmatprep.subr.bf16.mxu0 0
  %283 = vmatpush1.bf16.msra.mxu0 0
  %284 = vmatprep.subr.bf16.mxu0 0
  %285 = vmatpush1.bf16.msra.mxu0 0
  %286 = vmatprep.subr.bf16.mxu0 0
  %287 = vmatpush1.bf16.msra.mxu0 0
  %288 = vmatprep.subr.bf16.mxu0 0
  %289 = vmatpush1.bf16.msra.mxu0 0
  %290 = vmatprep.subr.bf16.mxu0 0
  %291 = vmatpush1.bf16.msra.mxu0 0
  %292 = vmatprep.subr.bf16.mxu0 0
  %293 = vmatpush1.bf16.msra.mxu0 0
  %294 = vmatprep.subr.bf16.mxu0 0
  %295 = vmatpush1.bf16.msra.mxu0 0
  %296 = vmatprep.subr.bf16.mxu0 0
  %297 = vmatpush1.bf16.msra.mxu0 0
  %298 = vmatprep.subr.bf16.mxu0 0
  %299 = vmatpush1.bf16.msra.mxu0 0
  %300 = vmatprep.mubr.bf16.mxu0 0
  %301 = vmatmul.mubr.bf16.gmra.mrb[0].mxu0 %v41
  %v302 = vpop.f32.mrb[0].mxu0
  %v303 = vadd.f32 0.0, %v302
  %v304 = vpop.f32.mrb[0].mxu0
  %v305 = vpop.f32.mrb[0].mxu0
  %v306 = vpop.f32.mrb[0].mxu0
  %307 = vdwg.mxu0
  %v312 = vunpack.c.l.b16 %v260
  %v313 = vunpack.c.l.b16 %v261
  %v314 = vunpack.c.l.b16 %v262
  %v315 = vunpack.c.l.b16 %v263
  %v316 = vpack.c.b16 %v313, %v312
  %v317 = vpack.c.b16 %v315, %v314
  %320 = vmatprep.subr.bf16.mxu0 0
  %321 = vmatpush1.bf16.msra.mxu0 %v316
  %322 = vmatprep.subr.bf16.mxu0 0
  %323 = vmatpush1.bf16.msra.mxu0 %v317
  %324 = vmatprep.subr.bf16.mxu0 0
  %325 = vmatpush1.bf16.msra.mxu0 0
  %326 = vmatprep.subr.bf16.mxu0 0
  %327 = vmatpush1.bf16.msra.mxu0 0
  %328 = vmatprep.subr.bf16.mxu0 0
  %329 = vmatpush1.bf16.msra.mxu0 0
  %330 = vmatprep.subr.bf16.mxu0 0
  %331 = vmatpush1.bf16.msra.mxu0 0
  %332 = vmatprep.subr.bf16.mxu0 0
  %333 = vmatpush1.bf16.msra.mxu0 0
  %334 = vmatprep.subr.bf16.mxu0 0
  %335 = vmatpush1.bf16.msra.mxu0 0
  %336 = vmatprep.subr.bf16.mxu0 0
  %337 = vmatpush1.bf16.msra.mxu0 0
  %338 = vmatprep.subr.bf16.mxu0 0
  %339 = vmatpush1.bf16.msra.mxu0 0
  %340 = vmatprep.subr.bf16.mxu0 0
  %341 = vmatpush1.bf16.msra.mxu0 0
  %342 = vmatprep.subr.bf16.mxu0 0
  %343 = vmatpush1.bf16.msra.mxu0 0
  %344 = vmatprep.subr.bf16.mxu0 0
  %345 = vmatpush1.bf16.msra.mxu0 0
  %346 = vmatprep.subr.bf16.mxu0 0
  %347 = vmatpush1.bf16.msra.mxu0 0
  %348 = vmatprep.subr.bf16.mxu0 0
  %349 = vmatpush1.bf16.msra.mxu0 0
  %350 = vmatprep.subr.bf16.mxu0 0
  %351 = vmatpush1.bf16.msra.mxu0 0
  %352 = vmatprep.mubr.bf16.mxu0 0
  %353 = vmatmul.mubr.bf16.gmra.mrb[0].mxu0 %v218
  %v354 = vpop.f32.mrb[0].mxu0
  %v355 = vadd.f32 %v303, %v354
  %v356 = vpop.f32.mrb[0].mxu0
  %v357 = vpop.f32.mrb[0].mxu0
  %v358 = vpop.f32.mrb[0].mxu0
  %359 = vdwg.mxu0
  %v360 = vld [vmem:[%s7] sm:$0x1]
  %v362 = vlaneseq
  %v363 = vshrl.u32 %v362, 7
  %v364 = vsub.s32 0, %v363
  %v365 = vrot.slane %v360, %v364
  %v367 = vadd.f32 %v355, %v365
  %v368 = vpack.c.bf16 %v367, %v367
  %v370 = vsel %vm98, %v368, 0
  %372 = vmatprep.subr.bf16.mxu0 0
  %373 = vmatpush1.bf16.xpose.msra.mxu0 %v370
  %374 = vmatprep.subr.bf16.mxu0 0
  %375 = vmatpush1.bf16.xpose.msra.mxu0 0
  %376 = vmatprep.subr.bf16.mxu0 0
  %377 = vmatpush1.bf16.xpose.msra.mxu0 0
  %378 = vmatprep.subr.bf16.mxu0 0
  %379 = vmatpush1.bf16.xpose.msra.mxu0 0
  %380 = vmatprep.subr.bf16.mxu0 0
  %381 = vmatpush1.bf16.xpose.msra.mxu0 0
  %382 = vmatprep.subr.bf16.mxu0 0
  %383 = vmatpush1.bf16.xpose.msra.mxu0 0
  %384 = vmatprep.subr.bf16.mxu0 0
  %385 = vmatpush1.bf16.xpose.msra.mxu0 0
  %386 = vmatprep.subr.bf16.mxu0 0
  %387 = vmatpush1.bf16.xpose.msra.mxu0 0
  %388 = vmatprep.subr.bf16.mxu0 0
  %389 = vmatpush1.bf16.xpose.msra.mxu0 0
  %390 = vmatprep.subr.bf16.mxu0 0
  %391 = vmatpush1.bf16.xpose.msra.mxu0 0
  %392 = vmatprep.subr.bf16.mxu0 0
  %393 = vmatpush1.bf16.xpose.msra.mxu0 0
  %394 = vmatprep.subr.bf16.mxu0 0
  %395 = vmatpush1.bf16.xpose.msra.mxu0 0
  %396 = vmatprep.subr.bf16.mxu0 0
  %397 = vmatpush1.bf16.xpose.msra.mxu0 0
  %398 = vmatprep.subr.bf16.mxu0 0
  %399 = vmatpush1.bf16.xpose.msra.mxu0 0
  %400 = vmatprep.subr.bf16.mxu0 0
  %401 = vmatpush1.bf16.xpose.msra.mxu0 0
  %402 = vmatprep.subr.bf16.mxu0 0
  %403 = vmatpush1.bf16.xpose.msra.mxu0 0
  %404 = vmatprep.mubr.bf16.mxu0 0
  %405 = vmatmul.mubr.bf16.gmra.mrb[0].mxu0 %v370
  %v406 = vpop.f32.mrb[0].mxu0
  %v407 = vadd.f32 0.0, %v406
  %v408 = vpop.f32.mrb[0].mxu0
  %v409 = vpop.f32.mrb[0].mxu0
  %v410 = vpop.f32.mrb[0].mxu0
  %411 = vdwg.mxu0
  %v412 = vld [vmem:[%s9] sm:$0xff]
  %v414 = vsel %vm39, %v407, 0
  %416 = vmatprep.subr.mxu0 0.0
  %417 = vmatpush1.msra.mxu0 %v412
  %418 = vmatprep.subr.mxu0 0.0
  %419 = vmatpush1.msra.mxu0 0.0
  %420 = vmatprep.subr.mxu0 0.0
  %421 = vmatpush1.msra.mxu0 0.0
  %422 = vmatprep.subr.mxu0 0.0
  %423 = vmatpush1.msra.mxu0 0.0
  %424 = vmatprep.subr.mxu0 0.0
  %425 = vmatpush1.msra.mxu0 0.0
  %426 = vmatprep.subr.mxu0 0.0
  %427 = vmatpush1.msra.mxu0 0.0
  %428 = vmatprep.subr.mxu0 0.0
  %429 = vmatpush1.msra.mxu0 0.0
  %430 = vmatprep.subr.mxu0 0.0
  %431 = vmatpush1.msra.mxu0 0.0
  %432 = vmatprep.subr.mxu0 0.0
  %433 = vmatpush1.msra.mxu0 0.0
  %434 = vmatprep.subr.mxu0 0.0
  %435 = vmatpush1.msra.mxu0 0.0
  %436 = vmatprep.subr.mxu0 0.0
  %437 = vmatpush1.msra.mxu0 0.0
  %438 = vmatprep.subr.mxu0 0.0
  %439 = vmatpush1.msra.mxu0 0.0
  %440 = vmatprep.subr.mxu0 0.0
  %441 = vmatpush1.msra.mxu0 0.0
  %442 = vmatprep.subr.mxu0 0.0
  %443 = vmatpush1.msra.mxu0 0.0
  %444 = vmatprep.subr.mxu0 0.0
  %445 = vmatpush1.msra.mxu0 0.0
  %446 = vmatprep.subr.mxu0 0.0
  %447 = vmatpush1.msra.mxu0 0.0
  %448 = vmatprep.subr.mxu0 0.0
  %449 = vmatpush1.msra.mxu0 0.0
  %450 = vmatprep.subr.mxu0 0.0
  %451 = vmatpush1.msra.mxu0 0.0
  %452 = vmatprep.subr.mxu0 0.0
  %453 = vmatpush1.msra.mxu0 0.0
  %454 = vmatprep.subr.mxu0 0.0
  %455 = vmatpush1.msra.mxu0 0.0
  %456 = vmatprep.subr.mxu0 0.0
  %457 = vmatpush1.msra.mxu0 0.0
  %458 = vmatprep.subr.mxu0 0.0
  %459 = vmatpush1.msra.mxu0 0.0
  %460 = vmatprep.subr.mxu0 0.0
  %461 = vmatpush1.msra.mxu0 0.0
  %462 = vmatprep.subr.mxu0 0.0
  %463 = vmatpush1.msra.mxu0 0.0
  %464 = vmatprep.subr.mxu0 0.0
  %465 = vmatpush1.msra.mxu0 0.0
  %466 = vmatprep.subr.mxu0 0.0
  %467 = vmatpush1.msra.mxu0 0.0
  %468 = vmatprep.subr.mxu0 0.0
  %469 = vmatpush1.msra.mxu0 0.0
  %470 = vmatprep.subr.mxu0 0.0
  %471 = vmatpush1.msra.mxu0 0.0
  %472 = vmatprep.subr.mxu0 0.0
  %473 = vmatpush1.msra.mxu0 0.0
  %474 = vmatprep.subr.mxu0 0.0
  %475 = vmatpush1.msra.mxu0 0.0
  %476 = vmatprep.subr.mxu0 0.0
  %477 = vmatpush1.msra.mxu0 0.0
  %478 = vmatprep.subr.mxu0 0.0
  %479 = vmatpush1.msra.mxu0 0.0
  %480 = vmatprep.mubr.f32.mxu0 0.0
  %481 = vmatmul.mubr.f32.gmra.mrb[0].mxu0 %v414
  %v482 = vpop.f32.mrb[0].mxu0
  %v483 = vadd.f32 0.0, %v482
  %v484 = vpop.f32.mrb[0].mxu0
  %485 = vdwg.mxu0
  %v486 = vld [vmem:[%s8] sm:$0xff]
  %v487 = vmul.f32 %v486, %v483
  %v488 = vrot.slane %v487, 4
  %v489 = vadd.f32 %v487, %v488
  %v490 = vrot.slane %v489, 2
  %v491 = vadd.f32 %v489, %v490
  %v492 = vrot.slane %v491, 1
  %v493 = vadd.f32 %v491, %v492
  %494 = vst [vmem:[%s10] sm:$0x1] %v493
  // Predicated region
  $region42: #{model_forward.1} parent=0 // pred_check
    _
  $region43: #{model_forward.1} parent=0 // pred_check_branch
    %496 = sbr.rel (0) target = $region45
  $region44: #{model_forward.1} parent=0 // pred_region
    _
  $region45: #{model_forward.1} parent=0 // pred_fallthru
    _
  // Predicated region
  $region46: #{model_forward.1} parent=0 // pred_check
    _
  $region47: #{model_forward.1} parent=0 // pred_check_branch
    %498 = sbr.rel (0) target = $region49
  $region48: #{model_forward.1} parent=0 // pred_region
    _
  $region49: #{model_forward.1} parent=0 // pred_fallthru
    _

</llo_original>
